<compile_context>
chip_gen: v5e
topology: v5e:2x2
jax: 0.10.0
libtpu: 0.0.40
codegen_flags: <defaults>
</compile_context>

<pallas_src>
import jax
import jax.numpy as jnp
from jax.experimental import pallas as pl
from jax.experimental.pallas import tpu as pltpu

H = 16  # feature size fixed by nn.Linear(16, 16)


def height_channel_att_kernel(x_ref, w_ref, b_ref, o_ref):
    # x_ref: (TB, C, H) input tile
    # w_ref: (H, 3H) fused Wq|Wk|Wv, pre-transposed so y = x @ w + b, f32
    # b_ref: (1, 3H) fused bias, f32
    # o_ref: (TB, H, C) transposed output tile (lane-dense along C)
    tb, C, _ = x_ref.shape

    # ---- fused QKV projection: one flat 2-D matmul, weight loaded once ----
    x2 = x_ref[...].reshape(tb * C, H).astype(jnp.float32)          # (TB*C, H)
    qkv = jnp.dot(x2, w_ref[...], preferred_element_type=jnp.float32)
    qkv = (qkv + b_ref[...]).reshape(tb, C, 3 * H)                   # (TB, C, 3H)

    q = qkv[..., 0 * H:1 * H]                                        # (TB, C, H)
    k = qkv[..., 1 * H:2 * H]
    v = qkv[..., 2 * H:3 * H]

    # Tiny per-batch (C,16)->(16,C) transposes so both big matmuls are NN-form
    # and the PV matmul / output are lane-dense along C.
    qT = jnp.swapaxes(q, 1, 2)                                       # (TB, H, C)
    vT = jnp.swapaxes(v, 1, 2)                                       # (TB, H, C)

    # Scores, transposed: sT[b, d, c] = sum_h k[b,d,h] * q[b,c,h].
    # bf16 operands, f32 accumulation (MXU-native).
    sT = jnp.einsum("bdh,bhc->bdc",
                    k.astype(jnp.bfloat16), qT.astype(jnp.bfloat16),
                    preferred_element_type=jnp.float32)              # (TB, C, C)

    # Numerically stable softmax over the KEY axis d (= torch Softmax(dim=2)),
    # which is the sublane axis here.  Normalization is deferred.
    sT = sT - jnp.max(sT, axis=1, keepdims=True)
    p = jnp.exp(sT)                                                  # f32
    denom = jnp.sum(p, axis=1, keepdims=True)                        # (TB, 1, C)

    # PV matmul in transposed form: (TB, 16, C) @ (TB, C, C) -> (TB, 16, C);
    # N == C fills the MXU output columns.
    oT = jnp.einsum("bhd,bdc->bhc",
                    vT.astype(jnp.bfloat16), p.astype(jnp.bfloat16),
                    preferred_element_type=jnp.float32)              # (TB, H, C)

    # Deferred normalization on the small (TB, 1, C) row sums: EUP approximate
    # reciprocal refined with one Newton step (removes the ~1e-4 approx error).
    r = pl.reciprocal(denom, approx=True)
    r = r * (2.0 - denom * r)
    o_ref[...] = (oT * r).astype(o_ref.dtype)


def _vmem_capacity_bytes():
    try:
        cap = int(pltpu.get_tpu_info().vmem_capacity_bytes)
        if cap > 0:
            return cap
    except Exception:
        pass
    return 64 * 1024 * 1024  # conservative (v7x-sized) fallback


def _vmem_limit_bytes():
    # ~75% of physical VMEM: ~48 MiB on v7x (64 MiB/TC), ~96 MiB on v5e/v6e.
    return int(0.75 * _vmem_capacity_bytes())


def _per_batch_vmem_bytes(C):
    lane = 128
    # (C, 16)-shaped f32 tensors (x, qkv, q/k/v, bf16/transposed copies) pad
    # their last dim to 128 lanes; count ~8 such copies, plus the x input tile
    # double-buffered by the BlockSpec pipeline.
    small = 8 * 4 * C * lane + 2 * 4 * C * lane
    # (C, C) score tensors: sT (f32) + exp(sT) (f32) + bf16 copy ~ 2.5x f32.
    big = 10 * C * C
    # (16, C) PV result + double-buffered output tile.
    out = 4 * 4 * 16 * max(C, lane)
    return small + big + out


def _pick_tb(batch, channels):
    # Size TB from the generation-aware VMEM budget, leaving ~half of the
    # scoped limit as headroom for compiler scratch / pipeline slop.
    budget = _vmem_limit_bytes() // 2
    per_batch = max(1, _per_batch_vmem_bytes(channels))
    cap = max(1, budget // per_batch)
    # Keep >= ~8 grid steps when B permits so v7x's two TensorCores each get
    # >= 4 iterations and the pipeline can overlap DMA/writeback with compute
    # (per-step overhead ~0.35us is negligible vs. C^2-scale compute).
    if batch >= 8:
        cap = min(cap, batch // 8)
    elif batch >= 2:
        cap = min(cap, batch // 2)
    cap = max(1, min(cap, batch))
    tb = 1
    for d in range(1, cap + 1):
        if batch % d == 0:
            tb = d
    return tb


def height_channel_att(x, wq_t, wk_t, wv_t, bq, bk, bv):
    """x: (B, C, H=16). Weights wq_t/wk_t/wv_t: (H, H) already transposed so
    y = x @ w_t + b matches torch.nn.Linear. Biases: (1, H)."""
    B, C, Hd = x.shape
    assert Hd == H

    # Fuse the three projections; cast params to f32 once (not per grid step).
    w_qkv = jnp.concatenate([wq_t, wk_t, wv_t], axis=1).astype(jnp.float32)
    b_qkv = jnp.concatenate([jnp.reshape(bq, (1, H)),
                             jnp.reshape(bk, (1, H)),
                             jnp.reshape(bv, (1, H))],
                            axis=1).astype(jnp.float32)              # (1, 3H)

    tb = _pick_tb(B, C)
    grid = (B // tb,)

    out_t = pl.pallas_call(
        height_channel_att_kernel,
        out_shape=jax.ShapeDtypeStruct((B, H, C), x.dtype),          # transposed
        grid_spec=pltpu.PrefetchScalarGridSpec(
            num_scalar_prefetch=0,
            grid=grid,
            in_specs=[
                pl.BlockSpec((tb, C, H), lambda b: (b, 0, 0)),       # x tile
                pl.BlockSpec((H, 3 * H), lambda b: (0, 0)),          # fused W
                pl.BlockSpec((1, 3 * H), lambda b: (0, 0)),          # fused bias
            ],
            out_specs=pl.BlockSpec((tb, H, C), lambda b: (b, 0, 0)),
        ),
        compiler_params=pltpu.CompilerParams(
            dimension_semantics=("parallel",),
            vmem_limit_bytes=_vmem_limit_bytes(),
        ),
    )(x, w_qkv, b_qkv)

    # Un-transpose the lane-dense (B, 16, C) kernel output back to (B, C, 16).
    return jnp.swapaxes(out_t, 1, 2)


def reference(x, wq_t, wk_t, wv_t, bq, bk, bv):
    q = x @ wq_t + bq
    k = x @ wk_t + bk
    v = x @ wv_t + bv
    w = jnp.einsum("bch,bdh->bcd", q, k)
    w = jax.nn.softmax(w, axis=2)
    return jnp.einsum("bcd,bdh->bch", w, v)


if __name__ == "__main__":
    key = jax.random.PRNGKey(0)
    kx, kq, kk, kv, kbq, kbk, kbv = jax.random.split(key, 7)

    B, C = 2, 8
    x = jax.random.normal(kx, (B, C, H), dtype=jnp.float32)

    # Deterministic parameter init (shapes from nn.Linear(16, 16)); torch
    # Linear weight is (out, in), we store the transpose (in, out).
    bound = 1.0 / (H ** 0.5)
    wq_t = jax.random.uniform(kq, (H, H), jnp.float32, -bound, bound)
    wk_t = jax.random.uniform(kk, (H, H), jnp.float32, -bound, bound)
    wv_t = jax.random.uniform(kv, (H, H), jnp.float32, -bound, bound)
    bq = jax.random.uniform(kbq, (1, H), jnp.float32, -bound, bound)
    bk = jax.random.uniform(kbk, (1, H), jnp.float32, -bound, bound)
    bv = jax.random.uniform(kbv, (1, H), jnp.float32, -bound, bound)

    out = height_channel_att(x, wq_t, wk_t, wv_t, bq, bk, bv)
    out = jax.block_until_ready(out)

    ref = reference(x, wq_t, wk_t, wv_t, bq, bk, bv)
    assert out.shape == (B, C, H)
    # bf16 MXU operands (f32 accumulation) bound the error well below 2e-2 at
    # these magnitudes; the softmax denominator reciprocal is Newton-refined.
    err = float(jnp.max(jnp.abs(out - ref)))
    assert err < 2e-2, f"mismatch vs reference: max abs err {err}"

    print("KERNEL_OK")
</pallas_src>

<mosaic_0001>
module attributes {stable_mosaic.version = 11 : i64} {
  func.func @height_channel_att_kernel(%arg0: i32, %arg1: memref<1x8x16xf32, #tpu.memory_space<vmem>>, %arg2: memref<16x48xf32, #tpu.memory_space<vmem>>, %arg3: memref<1x48xf32, #tpu.memory_space<vmem>>, %arg4: memref<1x16x8xf32, #tpu.memory_space<vmem>>) attributes {dimension_semantics = [#tpu.dimension_semantics<parallel>], iteration_bounds = array<i64: 2>, scalar_prefetch = 0 : i64, scratch_operands = 0 : i64, tpu.core_type = #tpu.core_type<tc>, window_params = [{transform_indices = @transform_0, window_bounds = array<i64: 1, 8, 16>}, {pipeline_mode = #tpu.pipeline_mode<synchronous>, transform_indices = @transform_1, window_bounds = array<i64: 16, 48>}, {pipeline_mode = #tpu.pipeline_mode<synchronous>, transform_indices = @transform_2, window_bounds = array<i64: 1, 48>}, {transform_indices = @transform_3, window_bounds = array<i64: 1, 16, 8>}]} {
    %c0 = arith.constant 0 : index
    %c0_0 = arith.constant 0 : index
    %c0_1 = arith.constant 0 : index
    %0 = vector.load %arg1[%c0, %c0_0, %c0_1] : memref<1x8x16xf32, #tpu.memory_space<vmem>>, vector<1x8x16xf32>
    %1 = vector.shape_cast %0 : vector<1x8x16xf32> to vector<8x16xf32>
    %c0_2 = arith.constant 0 : index
    %c0_3 = arith.constant 0 : index
    %2 = vector.load %arg2[%c0_2, %c0_3] : memref<16x48xf32, #tpu.memory_space<vmem>>, vector<16x48xf32>
    %cst = arith.constant dense<0.000000e+00> : vector<8x48xf32>
    %3 = tpu.matmul %1, %2, %cst {dimension_numbers = #tpu.dot_dimension_numbers<[1], [0], [0], [1], [0, 0, 1, 1], [], []>} : vector<8x16xf32>, vector<16x48xf32>, vector<8x48xf32> -> vector<8x48xf32>
    %c0_4 = arith.constant 0 : index
    %c0_5 = arith.constant 0 : index
    %4 = vector.load %arg3[%c0_4, %c0_5] : memref<1x48xf32, #tpu.memory_space<vmem>>, vector<1x48xf32>
    %5 = vector.broadcast %4 : vector<1x48xf32> to vector<8x48xf32>
    %6 = arith.addf %3, %5 : vector<8x48xf32>
    %7 = vector.shape_cast %6 : vector<8x48xf32> to vector<1x8x48xf32>
    %8 = vector.extract_strided_slice %7 {offsets = [0, 0, 0], sizes = [1, 8, 16], strides = [1, 1, 1]} : vector<1x8x48xf32> to vector<1x8x16xf32>
    %9 = vector.extract_strided_slice %7 {offsets = [0, 0, 16], sizes = [1, 8, 16], strides = [1, 1, 1]} : vector<1x8x48xf32> to vector<1x8x16xf32>
    %10 = vector.extract_strided_slice %7 {offsets = [0, 0, 32], sizes = [1, 8, 16], strides = [1, 1, 1]} : vector<1x8x48xf32> to vector<1x8x16xf32>
    %11 = tpu.transpose %8, [0, 2, 1] : vector<1x8x16xf32> -> vector<1x16x8xf32>
    %12 = tpu.transpose %10, [0, 2, 1] : vector<1x8x16xf32> -> vector<1x16x8xf32>
    %13 = arith.truncf %9 : vector<1x8x16xf32> to vector<1x8x16xbf16>
    %14 = arith.truncf %11 : vector<1x16x8xf32> to vector<1x16x8xbf16>
    "tpu.trace_start"() <{level = 10 : i32, message = "bdh,bhc->bdc"}> : () -> ()
    %cst_6 = arith.constant dense<0.000000e+00> : vector<1x8x8xf32>
    %15 = tpu.matmul %13, %14, %cst_6 {dimension_numbers = #tpu.dot_dimension_numbers<[2], [1], [1], [2], [0, 0, 0, 1, 1, 2], [0], [0]>} : vector<1x8x16xbf16>, vector<1x16x8xbf16>, vector<1x8x8xf32> -> vector<1x8x8xf32>
    "tpu.trace_stop"() : () -> ()
    %cst_7 = arith.constant dense<0xFF800000> : vector<1x8xf32>
    %16 = vector.multi_reduction <maximumf>, %15, %cst_7 [1] : vector<1x8x8xf32> to vector<1x8xf32>
    %17 = vector.shape_cast %16 : vector<1x8xf32> to vector<1x1x8xf32>
    %18 = vector.broadcast %17 : vector<1x1x8xf32> to vector<1x8x8xf32>
    %19 = arith.subf %15, %18 : vector<1x8x8xf32>
    %20 = math.exp %19 : vector<1x8x8xf32>
    %cst_8 = arith.constant dense<0.000000e+00> : vector<1x8xf32>
    %21 = vector.multi_reduction <add>, %20, %cst_8 [1] : vector<1x8x8xf32> to vector<1x8xf32>
    %22 = vector.shape_cast %21 : vector<1x8xf32> to vector<1x1x8xf32>
    %23 = arith.truncf %12 : vector<1x16x8xf32> to vector<1x16x8xbf16>
    %24 = arith.truncf %20 : vector<1x8x8xf32> to vector<1x8x8xbf16>
    "tpu.trace_start"() <{level = 10 : i32, message = "bhd,bdc->bhc"}> : () -> ()
    %cst_9 = arith.constant dense<0.000000e+00> : vector<1x16x8xf32>
    %25 = tpu.matmul %23, %24, %cst_9 {dimension_numbers = #tpu.dot_dimension_numbers<[2], [1], [1], [2], [0, 0, 0, 1, 1, 2], [0], [0]>} : vector<1x16x8xbf16>, vector<1x8x8xbf16>, vector<1x16x8xf32> -> vector<1x16x8xf32>
    "tpu.trace_stop"() : () -> ()
    %26 = tpu.reciprocal %22 {approx = true} : vector<1x1x8xf32> -> vector<1x1x8xf32>
    %27 = arith.mulf %22, %26 : vector<1x1x8xf32>
    %cst_10 = arith.constant 2.000000e+00 : f32
    %28 = vector.broadcast %cst_10 : f32 to vector<1x1x8xf32>
    %29 = arith.subf %28, %27 : vector<1x1x8xf32>
    %30 = arith.mulf %26, %29 : vector<1x1x8xf32>
    %31 = vector.broadcast %30 : vector<1x1x8xf32> to vector<1x16x8xf32>
    %32 = arith.mulf %25, %31 : vector<1x16x8xf32>
    %c0_11 = arith.constant 0 : index
    %c0_12 = arith.constant 0 : index
    %c0_13 = arith.constant 0 : index
    %33 = vector.load %arg4[%c0_11, %c0_12, %c0_13] : memref<1x16x8xf32, #tpu.memory_space<vmem>>, vector<1x16x8xf32>
    tpu.vector_store %arg4[%c0_11, %c0_12, %c0_13], %32 {strides = array<i32>} : memref<1x16x8xf32, #tpu.memory_space<vmem>>, vector<1x16x8xf32>,
    return
  }
  func.func @transform_0(%arg0: i32) -> (i32, i32, i32) {
    %c0_i32 = arith.constant 0 : i32
    %c0_i32_0 = arith.constant 0 : i32
    %c0_i32_1 = arith.constant 0 : i32
    return %arg0, %c0_i32, %c0_i32_0 : i32, i32, i32
  }
  func.func @transform_1(%arg0: i32) -> (i32, i32) {
    %c0_i32 = arith.constant 0 : i32
    %c0_i32_0 = arith.constant 0 : i32
    %c0_i32_1 = arith.constant 0 : i32
    return %c0_i32, %c0_i32_0 : i32, i32
  }
  func.func @transform_2(%arg0: i32) -> (i32, i32) {
    %c0_i32 = arith.constant 0 : i32
    %c0_i32_0 = arith.constant 0 : i32
    %c0_i32_1 = arith.constant 0 : i32
    return %c0_i32, %c0_i32_0 : i32, i32
  }
  func.func @transform_3(%arg0: i32) -> (i32, i32, i32) {
    %c0_i32 = arith.constant 0 : i32
    %c0_i32_0 = arith.constant 0 : i32
    %c0_i32_1 = arith.constant 0 : i32
    return %arg0, %c0_i32, %c0_i32_0 : i32, i32, i32
  }
}

</mosaic_0001>

<llo_original>
// kernel: tpu_custom_call.1
$region0: #{tpu_custom_call.1}
  #allocation0 [shape = 'u32[]', space=smem, size = 0x4, offset = 0x4, fixed_abs, tag = 'smem constant byte address 0x4 - core index']
  #allocation1 [shape = 'u32[72,128]{1,0:T(1,128)}', space=vmem, size = 0x9000, scoped, tag = 'internal scratch']
  %s0 = inlined_call_operand.hbm [shape: f32[2,8,16], index: 0, kind: input, shape index: {}]
  %s1 = inlined_call_operand.hbm [shape: f32[16,48], index: 1, kind: input, shape index: {}]
  %s2 = inlined_call_operand.vmem [shape: f32[1,48], index: 2, kind: input, shape index: {}]
  %s3 = inlined_call_operand.vmem [shape: f32[2,16,8], index: 3, kind: output, shape index: {}]
  %s4 = sld [smem:[#allocation0]]
  $region53: #{tpu_custom_call.1} parent=0
    _
  %s6 = ssub.s32 1, %s4
  %s7 = scalar_select 0, %s6, %s4
  $region1: #{tpu_custom_call.1} parent=0
    #allocation2 [shape = 'u8[8192]{0}', space=vmem, size = 0x2000, scoped, tag = 'input window, operand 0']
    #allocation3 [shape = 's32[2]{0}', space=sflag, size = 0x8, scoped, tag = 'scoped memory for tpu_custom_call.1']
    #allocation4 [shape = 'u8[8192]{0}', space=vmem, size = 0x2000, scoped, tag = 'input window, operand 1, single buffered']
    #allocation5 [shape = 's32[1]{0}', space=sflag, size = 0x4, scoped, tag = 'scoped memory for tpu_custom_call.1']
    %8 = vsyncpa [#allocation3], 0
    %s9 = scalar_lea.sflag [#allocation3], 1
    %10 = vsyncpa %s9, 0
    %11 = vsyncpa [#allocation5], 0
    loop: start=0, step=1, limit=4
    $region2: #{tpu_custom_call.1} parent=1 // loop_pre_header
      _
    $region3: #{tpu_custom_call.1} parent=1 // loop_header
      %s13 = sphi 0, %s17
      %p14 = scmp.ge.s32.totalorder %s13, 4
      %s23 = sphi 0, %s25
      %s26 = sphi 0, %s23
      %s27 = sphi 0, %s26
      %s43 = sphi 0, %s27
      %s47 = sphi 0, %s47
      %s49 = sphi 0, %s47
      %s50 = sphi 0, %s49
      %s64 = sphi 0, %s50
      %s68 = sphi 0, %s68
      %s70 = sphi 0, %s68
      %s71 = sphi 0, %s70
      %s85 = sphi 0, %s71
      %s91 = sphi 0, %s93
      %s94 = sphi 0, %s91
      %s95 = sphi 0, %s94
      %s111 = sphi 0, %s95
    $region4: #{tpu_custom_call.1} parent=1 // loop_header_branch
      %16 = sbr.rel (%p14) target = $region8
    $region5: #{tpu_custom_call.1} parent=1 // loop_body
      %s18 = ssub.s32 %s13, 1
      %s19 = ssub.s32 %s13, 2
      %s20 = sadd.s32 %s13, 1
      %s21 = ssub.s32 %s13, %s20
      %p22 = scmp.eq.s32.totalorder %s21, 0
      %s24 = sadd.s32 %s23, 1
      %s25 = scalar_select %p22, %s23, %s24
      %p28 = pneg %p22
      %p29 = scmp.eq.s32.totalorder %s13, 1
      %p30 = por %p28, %p29
      %p31 = scmp.ne.s32.totalorder %s23, %s26
      %p32 = scmp.eq.s32.totalorder %s13, 0
      %p33 = por %p31, %p32
      %p34 = scmp.ne.s32.totalorder %s23, %s26
      %p35 = scmp.eq.s32.totalorder %s18, 1
      %p36 = por %p34, %p35
      %p37 = scmp.ne.s32.totalorder %s26, %s27
      %p38 = scmp.eq.s32.totalorder %s18, 0
      %p39 = por %p37, %p38
      %p40 = scmp.ne.s32.totalorder %s26, %s27
      %p41 = scmp.eq.s32.totalorder %s19, 1
      %p42 = por %p40, %p41
      %p44 = scmp.ne.s32.totalorder %s27, %s43
      %p45 = scmp.eq.s32.totalorder %s19, 0
      %p46 = por %p44, %p45
      %s48 = sadd.s32 %s47, 1
      %p51 = scmp.eq.s32.totalorder %s13, 1
      %p52 = scmp.ne.s32.totalorder %s47, %s49
      %p53 = scmp.eq.s32.totalorder %s13, 0
      %p54 = por %p52, %p53
      %p55 = scmp.ne.s32.totalorder %s47, %s49
      %p56 = scmp.eq.s32.totalorder %s18, 1
      %p57 = por %p55, %p56
      %p58 = scmp.ne.s32.totalorder %s49, %s50
      %p59 = scmp.eq.s32.totalorder %s18, 0
      %p60 = por %p58, %p59
      %p61 = scmp.ne.s32.totalorder %s49, %s50
      %p62 = scmp.eq.s32.totalorder %s19, 1
      %p63 = por %p61, %p62
      %p65 = scmp.ne.s32.totalorder %s50, %s64
      %p66 = scmp.eq.s32.totalorder %s19, 0
      %p67 = por %p65, %p66
      %s69 = sadd.s32 %s68, 1
      %p72 = scmp.eq.s32.totalorder %s13, 1
      %p73 = scmp.ne.s32.totalorder %s68, %s70
      %p74 = scmp.eq.s32.totalorder %s13, 0
      %p75 = por %p73, %p74
      %p76 = scmp.ne.s32.totalorder %s68, %s70
      %p77 = scmp.eq.s32.totalorder %s18, 1
      %p78 = por %p76, %p77
      %p79 = scmp.ne.s32.totalorder %s70, %s71
      %p80 = scmp.eq.s32.totalorder %s18, 0
      %p81 = por %p79, %p80
      %p82 = scmp.ne.s32.totalorder %s70, %s71
      %p83 = scmp.eq.s32.totalorder %s19, 1
      %p84 = por %p82, %p83
      %p86 = scmp.ne.s32.totalorder %s71, %s85
      %p87 = scmp.eq.s32.totalorder %s19, 0
      %p88 = por %p86, %p87
      %s89 = ssub.s32 %s13, %s20
      %p90 = scmp.eq.s32.totalorder %s89, 0
      %s92 = sadd.s32 %s91, 1
      %s93 = scalar_select %p90, %s91, %s92
      %p96 = pneg %p90
      %p97 = scmp.eq.s32.totalorder %s13, 1
      %p98 = por %p96, %p97
      %p99 = scmp.ne.s32.totalorder %s91, %s94
      %p100 = scmp.eq.s32.totalorder %s13, 0
      %p101 = por %p99, %p100
      %p102 = scmp.ne.s32.totalorder %s91, %s94
      %p103 = scmp.eq.s32.totalorder %s18, 1
      %p104 = por %p102, %p103
      %p105 = scmp.ne.s32.totalorder %s94, %s95
      %p106 = scmp.eq.s32.totalorder %s18, 0
      %p107 = por %p105, %p106
      %p108 = scmp.ne.s32.totalorder %s94, %s95
      %p109 = scmp.eq.s32.totalorder %s19, 1
      %p110 = por %p108, %p109
      %p112 = scmp.ne.s32.totalorder %s95, %s111
      %p113 = scmp.eq.s32.totalorder %s19, 0
      %p114 = por %p112, %p113
      %p115 = scmp.le.s32.totalorder 1, %s13
      %p116 = scmp.lt.s32.totalorder %s13, 3
      %p117 = pnand %p115, %p116
      %p118 = pneg %p117
      // Predicated region
      $region9: #{tpu_custom_call.1} parent=5 // pred_check
        _
      $region10: #{tpu_custom_call.1} parent=5 // pred_check_branch
        %120 = sbr.rel (%p117) target = $region12
      $region11: #{tpu_custom_call.1} parent=5 // pred_region
        %s121 = ssub.s32 %s13, 1
        // Predicated region
        $region13: #{tpu_custom_call.1} parent=11 // pred_check
          %p122 = pneg %p60
        $region14: #{tpu_custom_call.1} parent=11 // pred_check_branch
          %124 = sbr.rel (%p122) target = $region16
        $region15: #{tpu_custom_call.1} parent=11 // pred_region
          %126 = vsyncadd [#allocation5], 0
          %s127 = sshll.u32 %s1, 4
          %s128 = int_to_ptr.hbm [resolvable:$true] %s127
          %s129 = sshll.u32 [#allocation4], 4
          %s130 = int_to_ptr.vmem [resolvable:$true] %s129
          %135 = dma.hbm_to_vmem [thread:$0]  %s128, 256, %s130, [#allocation5], 128, 128, 8
        $region16: #{tpu_custom_call.1} parent=11 // pred_fallthru
          _
        // Predicated region
        $region17: #{tpu_custom_call.1} parent=11 // pred_check
          %p136 = pneg %p81
        $region18: #{tpu_custom_call.1} parent=11 // pred_check_branch
          %138 = sbr.rel (%p136) target = $region20
        $region19: #{tpu_custom_call.1} parent=11 // pred_region
          _
        $region20: #{tpu_custom_call.1} parent=11 // pred_fallthru
          _
      $region12: #{tpu_custom_call.1} parent=5 // pred_fallthru
        _
      %p139 = scmp.lt.s32.totalorder %s13, 2
      // Predicated region
      $region21: #{tpu_custom_call.1} parent=5 // pred_check
        %p140 = pneg %p139
      $region22: #{tpu_custom_call.1} parent=5 // pred_check_branch
        %142 = sbr.rel (%p140) target = $region24
      $region23: #{tpu_custom_call.1} parent=5 // pred_region
        // Predicated region
        $region25: #{tpu_custom_call.1} parent=23 // pred_check
          %p143 = pneg %p33
        $region26: #{tpu_custom_call.1} parent=23 // pred_check_branch
          %145 = sbr.rel (%p143) target = $region28
        $region27: #{tpu_custom_call.1} parent=23 // pred_region
          %s146 = sand.u32 %s23, 1
          %s147 = scalar_lea.sflag [#allocation3], %s146
          %s148 = sand.u32 %s23, 1
          %s149 = smul.addr %s148, 8
          %s150 = scalar_lea.vmem [#allocation2], %s149
          %152 = vsyncadd %s147, 0
          %s153 = smul.addr %s13, 8
          %s154 = scalar_lea.hbm %s0, %s153
          %s156 = sshll.u32 %s154, 4
          %s157 = int_to_ptr.hbm [resolvable:$true] %s156
          %s158 = sshll.u32 %s150, 4
          %s159 = int_to_ptr.vmem [resolvable:$true] %s158
          %161 = dma.hbm_to_vmem [thread:$0]  %s157, 128, %s159, %s147
        $region28: #{tpu_custom_call.1} parent=23 // pred_fallthru
          _
      $region24: #{tpu_custom_call.1} parent=5 // pred_fallthru
        _
      %p162 = scmp.le.s32.totalorder 1, %s13
      %p163 = scmp.lt.s32.totalorder %s13, 3
      %p164 = pnand %p162, %p163
      %p165 = pneg %p164
      // Predicated region
      $region29: #{tpu_custom_call.1} parent=5 // pred_check
        _
      $region30: #{tpu_custom_call.1} parent=5 // pred_check_branch
        %167 = sbr.rel (%p164) target = $region32
      $region31: #{tpu_custom_call.1} parent=5 // pred_region
        %s168 = ssub.s32 %s13, 1
        %s169 = sand.u32 %s26, 1
        %s170 = scalar_lea.sflag [#allocation3], %s169
        %s171 = sand.u32 %s26, 1
        %s172 = smul.addr %s171, 8
        %s173 = scalar_lea.vmem [#allocation2], %s172
        // Predicated region
        $region33: #{tpu_custom_call.1} parent=31 // pred_check
          %p174 = pneg %p39
        $region34: #{tpu_custom_call.1} parent=31 // pred_check_branch
          %176 = sbr.rel (%p174) target = $region36
        $region35: #{tpu_custom_call.1} parent=31 // pred_region
          %178 = dma.done %s170, 128
        $region36: #{tpu_custom_call.1} parent=31 // pred_fallthru
          _
        // Predicated region
        $region37: #{tpu_custom_call.1} parent=31 // pred_check
          %p179 = pneg %p60
        $region38: #{tpu_custom_call.1} parent=31 // pred_check_branch
          %181 = sbr.rel (%p179) target = $region40
        $region39: #{tpu_custom_call.1} parent=31 // pred_region
          %183 = dma.done [#allocation5], 256
        $region40: #{tpu_custom_call.1} parent=31 // pred_fallthru
          _
        %s184 = sand.u32 %s26, 1
        %s185 = scalar_lea.sflag [#allocation3], %s184
        %s186 = sand.u32 %s26, 1
        %s187 = smul.addr %s186, 8
        %s188 = scalar_lea.vmem [#allocation2], %s187
        %p189 = pneg %p39
        %p190 = pneg %p36
        %p191 = pneg %p60
        %p192 = pneg %p57
        %p193 = pneg %p81
        %p194 = pneg %p78
        %p195 = pneg %p107
        %p196 = pneg %p104
        %p197 = scmp.lt.s32.totalorder %s18, 1
        %s198 = scalar_select %p197, %s18, 1
        %s199 = smul.addr %s198, 2
        %s200 = smul.addr %s199, 8
        %s201 = scalar_lea.vmem %s3, %s200
        %p202 = scmp.lt.s32.totalorder %s18, 1
        %s203 = scalar_select %p202, %s18, 1
        %s204 = smul.addr %s203, 2
        %s205 = smul.addr %s204, 8
        %s206 = scalar_lea.vmem %s3, %s205
        %v208 = vld [vmem:[%s173] sm:$0xff]
        %v209 = vld [vmem:[#allocation4] sm:$0xff]
        %v210 = vld [vmem:[#allocation4 + $0x8] sm:$0xff]
        %v211 = vld [vmem:[%s2] sm:$0x1]
        %v213 = vperm.slane %v211, 0
        %vm215 = vcmask 130048
        %v217 = vsel %vm215, %v208, 0
        %219 = vmatpush.msra.mxu0 0.0
        %220 = vmatpush.msra.mxu0 0.0
        %221 = vmatpush.msra.mxu0 0.0
        %222 = vmatpush.msra.mxu0 0.0
        %223 = vmatpush.msra.mxu0 0.0
        %224 = vmatpush.msra.mxu0 0.0
        %225 = vmatpush.msra.mxu0 0.0
        %226 = vmatpush.msra.mxu0 0.0
        %227 = vmatpush.msra.mxu0 0.0
        %228 = vmatpush.msra.mxu0 0.0
        %229 = vmatpush.msra.mxu0 0.0
        %230 = vmatpush.msra.mxu0 0.0
        %231 = vmatpush.msra.mxu0 0.0
        %232 = vmatpush.msra.mxu0 0.0
        %233 = vmatpush.msra.mxu0 %v210
        %234 = vmatpush.msra.mxu0 %v209
        %235 = vmatmul.f32.gmra.mxu0 %v217
        %v236 = vpop.f32.mrf.mxu0
        %v237 = vadd.f32 %v213, %v236
        %238 = vdwg.mxu0
        %239 = vxpose.xlu0.b32.start [1/16] %v237, 128
        %240 = vxpose.xlu0.b32.cont [2/16] 0.0, 128
        %241 = vxpose.xlu0.b32.cont [3/16] 0.0, 128
        %242 = vxpose.xlu0.b32.cont [4/16] 0.0, 128
        %243 = vxpose.xlu0.b32.cont [5/16] 0.0, 128
        %244 = vxpose.xlu0.b32.cont [6/16] 0.0, 128
        %245 = vxpose.xlu0.b32.cont [7/16] 0.0, 128
        %246 = vxpose.xlu0.b32.cont [8/16] 0.0, 128
        %247 = vxpose.xlu0.b32.cont [9/16] 0.0, 128
        %248 = vxpose.xlu0.b32.cont [10/16] 0.0, 128
        %249 = vxpose.xlu0.b32.cont [11/16] 0.0, 128
        %250 = vxpose.xlu0.b32.cont [12/16] 0.0, 128
        %251 = vxpose.xlu0.b32.cont [13/16] 0.0, 128
        %252 = vxpose.xlu0.b32.cont [14/16] 0.0, 128
        %253 = vxpose.xlu0.b32.cont [15/16] 0.0, 128
        %254 = vxpose.xlu0.b32.end [16/16] 0.0, 128
        %v255 = vpop.trf.xlu0
        %v256 = vpop.trf.xlu0
        %v257 = vpop.trf.xlu0
        %v258 = vpop.trf.xlu0
        %v259 = vpop.trf.xlu0
        %v260 = vpop.trf.xlu0
        %v261 = vpop.trf.xlu0
        %v262 = vpop.trf.xlu0
        %v263 = vpop.trf.xlu0
        %v264 = vpop.trf.xlu0
        %v265 = vpop.trf.xlu0
        %v266 = vpop.trf.xlu0
        %v267 = vpop.trf.xlu0
        %v268 = vpop.trf.xlu0
        %v269 = vpop.trf.xlu0
        %v270 = vpop.trf.xlu0
        %272 = vrot.lane.b32.xlu0 %v237, 96
        %v273 = vpop.permute.xlu0 %272
        %275 = vxpose.xlu0.b32.start [1/16] %v273, 128
        %276 = vxpose.xlu0.b32.cont [2/16] 0.0, 128
        %277 = vxpose.xlu0.b32.cont [3/16] 0.0, 128
        %278 = vxpose.xlu0.b32.cont [4/16] 0.0, 128
        %279 = vxpose.xlu0.b32.cont [5/16] 0.0, 128
        %280 = vxpose.xlu0.b32.cont [6/16] 0.0, 128
        %281 = vxpose.xlu0.b32.cont [7/16] 0.0, 128
        %282 = vxpose.xlu0.b32.cont [8/16] 0.0, 128
        %283 = vxpose.xlu0.b32.cont [9/16] 0.0, 128
        %284 = vxpose.xlu0.b32.cont [10/16] 0.0, 128
        %285 = vxpose.xlu0.b32.cont [11/16] 0.0, 128
        %286 = vxpose.xlu0.b32.cont [12/16] 0.0, 128
        %287 = vxpose.xlu0.b32.cont [13/16] 0.0, 128
        %288 = vxpose.xlu0.b32.cont [14/16] 0.0, 128
        %289 = vxpose.xlu0.b32.cont [15/16] 0.0, 128
        %290 = vxpose.xlu0.b32.end [16/16] 0.0, 128
        %v291 = vpop.trf.xlu0
        %v292 = vpop.trf.xlu0
        %v293 = vpop.trf.xlu0
        %v294 = vpop.trf.xlu0
        %v295 = vpop.trf.xlu0
        %v296 = vpop.trf.xlu0
        %v297 = vpop.trf.xlu0
        %v298 = vpop.trf.xlu0
        %v299 = vpop.trf.xlu0
        %v300 = vpop.trf.xlu0
        %v301 = vpop.trf.xlu0
        %v302 = vpop.trf.xlu0
        %v303 = vpop.trf.xlu0
        %v304 = vpop.trf.xlu0
        %v305 = vpop.trf.xlu0
        %v306 = vpop.trf.xlu0
        %v307 = vpack.c.bf16 %v237, %v237
        %v308 = vpack.c.bf16 %v255, %v255
        %v309 = vpack.c.bf16 %v256, %v256
        %v311 = vunpack.c.l.b16 %v307
        %v312 = vpack.c.b16 %v311, %v311
        %313 = vrot.lane.b32.xlu0 %v312, 112
        %v314 = vpop.permute.xlu0 %313
        %v317 = vunpack.c.l.b16 %v308
        %v318 = vunpack.c.l.b16 %v309
        %v319 = vpack.c.b16 %v318, %v317
        %v322 = vsel %vm215, %v314, 0
        %324 = vmatpush.bf16.msra.mxu0 0
        %325 = vmatpush.bf16.msra.mxu0 0
        %326 = vmatpush.bf16.msra.mxu0 0
        %327 = vmatpush.bf16.msra.mxu0 0
        %328 = vmatpush.bf16.msra.mxu0 0
        %329 = vmatpush.bf16.msra.mxu0 0
        %330 = vmatpush.bf16.msra.mxu0 0
        %331 = vmatpush.bf16.msra.mxu0 %v319
        %332 = vmatmul.bf16.gmra.mxu0 %v322
        %v333 = vpop.f32.mrf.mxu0
        %v334 = vadd.f32 0.0, %v333
        %v335 = vpop.f32.mrf.mxu0
        %336 = vdwg.mxu0
        %vm337 = vcmask 64512
        %v338 = vsel %vm337, %v334, -inf
        %v339 = vrot.slane %v338, 4
        %v340 = vmax.f32 %v338, %v339
        %v341 = vrot.slane %v340, 2
        %v342 = vmax.f32 %v340, %v341
        %v343 = vrot.slane %v342, 1
        %v344 = vmax.f32 %v342, %v343
        %v345 = vsub.f32 %v334, %v344
        %v346 = vmul.f32 %v345, 1.442695
        %v347 = vpow.pop %v346
        %v348 = vsel %vm337, %v347, 0.0
        %v349 = vrot.slane %v348, 4
        %v350 = vadd.f32 %v348, %v349
        %v351 = vrot.slane %v350, 2
        %v352 = vadd.f32 %v350, %v351
        %v353 = vrot.slane %v352, 1
        %v354 = vadd.f32 %v352, %v353
        %v355 = vpack.c.bf16 %v291, %v291
        %v356 = vpack.c.bf16 %v292, %v292
        %v357 = vpack.c.bf16 %v347, %v347
        %v360 = vunpack.c.l.b16 %v355
        %v361 = vunpack.c.l.b16 %v356
        %v362 = vpack.c.b16 %v361, %v360
        %v364 = vsel %vm337, %v362, 0
        %vm366 = vcmask 1043456
        %v368 = vsel %vm366, %v357, 0
        %370 = vmatpush.bf16.msra.mxu0 0
        %371 = vmatpush.bf16.msra.mxu0 0
        %372 = vmatpush.bf16.msra.mxu0 0
        %373 = vmatpush.bf16.msra.mxu0 0
        %374 = vmatpush.bf16.msra.mxu0 0
        %375 = vmatpush.bf16.msra.mxu0 0
        %376 = vmatpush.bf16.msra.mxu0 0
        %377 = vmatpush.bf16.msra.mxu0 %v368
        %378 = vmatmul.bf16.gmra.mxu0 %v364
        %v379 = vpop.f32.mrf.mxu0
        %v380 = vadd.f32 0.0, %v379
        %v381 = vpop.f32.mrf.mxu0
        %v382 = vadd.f32 0.0, %v381
        %383 = vdwg.mxu0
        %v384 = vrcp.pop %v354
        %v385 = vmul.f32 %v354, %v384
        %v386 = vsub.f32 2.0, %v385
        %v387 = vmul.f32 %v384, %v386
        %v388 = vmul.f32 %v380, %v387
        %v389 = vmul.f32 %v382, %v387
        %390 = vst.msk [vmem:[%s206] sm:$0xff] %vm337, %v388
        %391 = vst.msk [vmem:[%s206 + $0x8] sm:$0xff] %vm337, %v389
        %p392 = scmp.lt.s32.totalorder %s18, 1
        %s393 = scalar_select %p392, %s18, 1
        %s394 = smul.addr %s393, 2
        %s395 = smul.addr %s394, 8
        %s396 = scalar_lea.vmem %s3, %s395
        // Predicated region
        $region41: #{tpu_custom_call.1} parent=31 // pred_check
          %p397 = pneg %p104
        $region42: #{tpu_custom_call.1} parent=31 // pred_check_branch
          %399 = sbr.rel (%p397) target = $region44
        $region43: #{tpu_custom_call.1} parent=31 // pred_region
          _
        $region44: #{tpu_custom_call.1} parent=31 // pred_fallthru
          _
      $region32: #{tpu_custom_call.1} parent=5 // pred_fallthru
        _
      %p400 = scmp.le.s32.totalorder 2, %s13
      // Predicated region
      $region45: #{tpu_custom_call.1} parent=5 // pred_check
        %p401 = pneg %p400
      $region46: #{tpu_custom_call.1} parent=5 // pred_check_branch
        %403 = sbr.rel (%p401) target = $region48
      $region47: #{tpu_custom_call.1} parent=5 // pred_region
        %s404 = ssub.s32 %s13, 2
        // Predicated region
        $region49: #{tpu_custom_call.1} parent=47 // pred_check
          %p405 = pneg %p110
        $region50: #{tpu_custom_call.1} parent=47 // pred_check_branch
          %407 = sbr.rel (%p405) target = $region52
        $region51: #{tpu_custom_call.1} parent=47 // pred_region
          %p408 = scmp.lt.s32.totalorder %s19, 1
          %s409 = scalar_select %p408, %s19, 1
          %s410 = smul.addr %s409, 2
          %s411 = smul.addr %s410, 8
          %s412 = scalar_lea.vmem %s3, %s411
        $region52: #{tpu_custom_call.1} parent=47 // pred_fallthru
          _
      $region48: #{tpu_custom_call.1} parent=5 // pred_fallthru
        _
    $region6: #{tpu_custom_call.1} parent=1 // loop_footer
      %s17 = sadd.s32 1, %s13
    $region7: #{tpu_custom_call.1} parent=1 // loop_footer_branch
      %12 = sbr.rel target = $region3
    $region8: #{tpu_custom_call.1} parent=1 // loop_exit
      _
    %413 = vsyncpa [#allocation3], 1
    %s414 = scalar_lea.sflag [#allocation3], 1
    %415 = vsyncpa %s414, 1
    %416 = vsyncpa [#allocation5], 1

</llo_original>
